<compile_context>
chip_gen: v6e
topology: v6e:2x2x1
jax: 0.10.0
libtpu: 0.0.40
codegen_flags: <defaults>
</compile_context>

<pallas_src>
import math

import jax
import jax.numpy as jnp
from jax import lax
from jax.experimental import pallas as pl
from jax.experimental.pallas import tpu as pltpu


def _make_sepconv_kernel(KH, KW, L, LCO, TOH, activation):
    def kernel(x_ref, dw_ref, pw_ref, b_ref, o_ref):
        # x_ref : (KW, Hp, L)   KW pre-shifted, lane-compacted padded images
        #                       (lane order [n, w, c]); resident across row tiles.
        # dw_ref: (KH*KW, L)    depthwise taps tiled across the packed lanes
        # pw_ref: (L, LCO)      block-diag pointwise weights with BN scale folded
        # b_ref : (1, LCO)      pointwise bias + BN shift, tiled on lanes
        # o_ref : (TOH, LCO)
        t = pl.program_id(0)
        row0 = pl.multiple_of(t * TOH, TOH)

        dw = dw_ref[...].astype(jnp.float32)        # hoisted, (KH*KW, L)
        bias = b_ref[...].astype(jnp.float32)       # hoisted, (1, LCO)

        # Depthwise 3x3: one (TOH+KH-1)-row slab load per kw, KH static sublane
        # slices of the in-register slab, lane-dense VPU MACs, f32 accumulation.
        acc = jnp.zeros((TOH, L), jnp.float32)
        for kw in range(KW):
            slab = x_ref[kw, pl.ds(row0, TOH + KH - 1), :].astype(jnp.float32)
            for kh in range(KH):
                patch = lax.slice(slab, (kh, 0), (kh + TOH, L))
                idx = kh * KW + kw
                tap = lax.slice(dw, (idx, 0), (idx + 1, L))         # (1, L)
                acc = acc + patch * tap

        # Pointwise 1x1 conv + BN: a single MXU matmul against the block-diagonal
        # folded weight -> lane-dense (TOH, LCO) output slab.
        out = jnp.dot(acc, pw_ref[...], preferred_element_type=jnp.float32)
        out = out + bias
        if activation:
            out = out * jax.nn.sigmoid(out)          # Swish (EUP)
        o_ref[...] = out.astype(o_ref.dtype)

    return kernel


def separable_conv_block(x_nchw, dw_weight, pw_weight, pw_bias,
                         bn_gamma, bn_beta, bn_mean, bn_var,
                         *, eps=1e-3, norm=True, activation=False, toh=None):
    """Forward pass of SeparableConvBlock (eval-mode BN).

    x_nchw   : (N, CIN, H, W)
    dw_weight: (CIN, 1, 3, 3)     depthwise conv, groups=CIN, no bias
    pw_weight: (COUT, CIN, 1, 1)  pointwise conv
    pw_bias  : (COUT,)
    bn_*     : (COUT,)            BatchNorm2d affine + running stats
    returns  : (N, COUT, H, W)    NCHW
    """
    N, CIN, H, W = x_nchw.shape
    CIN_dw, grp_in, KH, KW = dw_weight.shape
    assert CIN_dw == CIN and grp_in == 1, "depthwise conv expects groups=CIN"
    COUT = pw_weight.shape[0]
    assert pw_weight.shape == (COUT, CIN, 1, 1)

    # --- TF-style static 'same' padding for the 3x3 stride-1 depthwise conv ---
    SH = SW = 1
    h_step = math.ceil(W / SW)
    v_step = math.ceil(H / SH)
    extra_h = SW * (h_step - 1) + 1 + (KW - 1) - W
    extra_v = SH * (v_step - 1) + 1 + (KH - 1) - H
    left = extra_h // 2
    right = extra_h - left
    top = extra_v // 2
    bottom = extra_v - top
    OH, OW = v_step, h_step

    L = N * OW * CIN           # packed lane width of the depthwise accumulator
    LCO = N * OW * COUT        # packed lane width of the output slab

    # NCHW -> NHWC -> pad, then build KW lane-aligned, compacted, batch-packed
    # copies: x_shift[kw][h, n*OW*CIN + w*CIN + c] = x_pad[n, h, w + kw, c].
    # TODO(synk): fuse this layout prep into the input DMA
    #             (CompilerParams(allow_input_fusion) or an in-kernel zeroed
    #             halo) to avoid the extra HBM round trip of the padded copies.
    x_nhwc = jnp.transpose(x_nchw, (0, 2, 3, 1))
    x_pad = lax.pad(
        x_nhwc, jnp.zeros((), x_nhwc.dtype),
        ((0, 0, 0), (top, bottom, 0), (left, right, 0), (0, 0, 0)))
    Hp = x_pad.shape[1]
    shifted = []
    for kw in range(KW):
        xs = lax.slice(x_pad, (0, 0, kw, 0), (N, Hp, kw + OW, CIN))
        shifted.append(jnp.transpose(xs, (1, 0, 2, 3)).reshape(Hp, L))
    x_shift = jnp.stack(shifted, axis=0)                  # (KW, Hp, L)

    # --- fold BatchNorm (eval mode) into the pointwise conv ---
    if norm:
        scale = bn_gamma / jnp.sqrt(bn_var + eps)         # (COUT,)
        shift = bn_beta - bn_mean * scale                 # (COUT,)
    else:
        scale = jnp.ones((COUT,), pw_bias.dtype)
        shift = jnp.zeros((COUT,), pw_bias.dtype)
    pw2 = pw_weight[:, :, 0, 0].T * scale[None, :]        # (CIN, COUT)
    b_fold = pw_bias * scale + shift                      # (COUT,)

    # Depthwise taps tiled across the N*OW packed lane groups.
    dw_taps = jnp.stack(
        [jnp.tile(dw_weight[:, 0, kh, kw], N * OW)
         for kh in range(KH) for kw in range(KW)], axis=0)    # (KH*KW, L)

    # Block-diagonal pointwise(+BN) weight -> one lane-dense MXU matmul.
    # TODO(synk): for large W / channel counts this O((N*OW)^2*CIN*COUT) weight
    #             must be W-tiled (a shared (TW*CIN, TW*COUT) block per W tile)
    #             to stay inside VMEM (64 MiB on v7x) and bound MXU zero work.
    pw_big = jnp.kron(jnp.eye(N * OW, dtype=pw2.dtype), pw2)  # (L, LCO)
    b_tiled = jnp.tile(b_fold, N * OW).reshape(1, LCO)        # (1, LCO)

    # Single grid step by default; toh=OH//2 gives two steps for v7x megacore.
    TOH = toh if toh is not None else OH
    assert OH % TOH == 0
    NT = OH // TOH

    kernel = _make_sepconv_kernel(KH, KW, L, LCO, TOH, activation)

    itemsize = x_nchw.dtype.itemsize
    flops = 2 * N * OH * OW * CIN * (KH * KW + COUT)
    transcendentals = N * OH * OW * COUT if activation else 0
    bytes_accessed = (x_shift.size + dw_taps.size + pw_big.size + b_tiled.size
                      + OH * LCO) * itemsize

    def _run(single_buffer):
        # Constant-index operands: single-buffered (their index_map never
        # changes, so double-buffering only wastes VMEM and descriptor work).
        extra = {"pipeline_mode": pl.Buffered(1)} if single_buffer else {}
        in_specs = [
            pl.BlockSpec((KW, Hp, L), lambda t: (0, 0, 0), **extra),
            pl.BlockSpec((KH * KW, L), lambda t: (0, 0), **extra),
            pl.BlockSpec((L, LCO), lambda t: (0, 0), **extra),
            pl.BlockSpec((1, LCO), lambda t: (0, 0), **extra),
        ]
        return pl.pallas_call(
            kernel,
            out_shape=jax.ShapeDtypeStruct((OH, LCO), x_nchw.dtype),
            grid_spec=pltpu.PrefetchScalarGridSpec(
                num_scalar_prefetch=0,
                grid=(NT,),
                in_specs=in_specs,
                out_specs=pl.BlockSpec((TOH, LCO), lambda t: (t, 0)),
            ),
            compiler_params=pltpu.CompilerParams(
                dimension_semantics=("parallel",),
                vmem_limit_bytes=32 * 1024 * 1024,
            ),
            cost_estimate=pl.CostEstimate(flops=flops,
                                          transcendentals=transcendentals,
                                          bytes_accessed=bytes_accessed),
        )(x_shift, dw_taps, pw_big, b_tiled)

    try:
        out_flat = _run(True)
    except Exception:
        # TODO(synk): drop fallback once pl.Buffered(1) is supported everywhere.
        out_flat = _run(False)

    # (OH, N*OW*COUT) lane order [n, w, co] -> NCHW.
    out = out_flat.reshape(OH, N, OW, COUT)
    return jnp.transpose(out, (1, 3, 0, 2))


def _reference(x_nchw, dw_weight, pw_weight, pw_bias,
               bn_gamma, bn_beta, bn_mean, bn_var,
               *, eps=1e-3, norm=True, activation=False):
    """Pure-JAX reference: same-pad depthwise conv -> 1x1 conv -> eval BN -> swish."""
    N, CIN, H, W = x_nchw.shape
    _, _, KH, KW = dw_weight.shape
    h_step, v_step = W, H                              # stride 1
    extra_h = (h_step - 1) + 1 + (KW - 1) - W
    extra_v = (v_step - 1) + 1 + (KH - 1) - H
    left = extra_h // 2
    right = extra_h - left
    top = extra_v // 2
    bottom = extra_v - top
    xp = jnp.pad(x_nchw, ((0, 0), (0, 0), (top, bottom), (left, right)))
    dw = lax.conv_general_dilated(
        xp, dw_weight, (1, 1), "VALID",
        dimension_numbers=("NCHW", "OIHW", "NCHW"), feature_group_count=CIN)
    pw = lax.conv_general_dilated(
        dw, pw_weight, (1, 1), "VALID",
        dimension_numbers=("NCHW", "OIHW", "NCHW"))
    y = pw + pw_bias.reshape(1, -1, 1, 1)
    if norm:
        y = ((y - bn_mean.reshape(1, -1, 1, 1))
             / jnp.sqrt(bn_var.reshape(1, -1, 1, 1) + eps)
             * bn_gamma.reshape(1, -1, 1, 1) + bn_beta.reshape(1, -1, 1, 1))
    if activation:
        y = y * jax.nn.sigmoid(y)
    return y


if __name__ == "__main__":
    # SeparableConvBlock(in_channels=4, out_channels=8), input (2, 4, 16, 16).
    N, CIN, H, W = 2, 4, 16, 16
    COUT = 8
    KH = KW = 3

    key = jax.random.PRNGKey(0)
    kx, kdw, kpw, kpb, kg, kb, km, kv = jax.random.split(key, 8)

    x = jax.random.normal(kx, (N, CIN, H, W), dtype=jnp.float32)

    # Depthwise conv (groups=CIN, bias=False): weight (CIN, 1, 3, 3)
    bdw = 1.0 / math.sqrt(1 * KH * KW)
    dw_w = jax.random.uniform(kdw, (CIN, 1, KH, KW), minval=-bdw, maxval=bdw,
                              dtype=jnp.float32)
    # Pointwise conv (1x1, bias=True): weight (COUT, CIN, 1, 1)
    bpw = 1.0 / math.sqrt(CIN)
    pw_w = jax.random.uniform(kpw, (COUT, CIN, 1, 1), minval=-bpw, maxval=bpw,
                              dtype=jnp.float32)
    pw_b = jax.random.uniform(kpb, (COUT,), minval=-bpw, maxval=bpw,
                              dtype=jnp.float32)
    # BatchNorm2d(COUT, eps=1e-3) parameters + running stats (eval mode).
    gamma = 1.0 + 0.1 * jax.random.normal(kg, (COUT,), dtype=jnp.float32)
    beta = 0.1 * jax.random.normal(kb, (COUT,), dtype=jnp.float32)
    rmean = 0.1 * jax.random.normal(km, (COUT,), dtype=jnp.float32)
    rvar = jax.random.uniform(kv, (COUT,), minval=0.5, maxval=1.5,
                              dtype=jnp.float32)

    # Default module config: norm=True, activation=False.
    out = separable_conv_block(x, dw_w, pw_w, pw_b, gamma, beta, rmean, rvar,
                               eps=1e-3, norm=True, activation=False)
    out = jax.block_until_ready(out)
    ref = _reference(x, dw_w, pw_w, pw_b, gamma, beta, rmean, rvar,
                     eps=1e-3, norm=True, activation=False)
    assert out.shape == ref.shape, (out.shape, ref.shape)
    assert jnp.allclose(out, ref, atol=1e-4, rtol=1e-4), "mismatch (norm only)"

    # Also exercise the Swish path (activation=True).
    out2 = jax.block_until_ready(
        separable_conv_block(x, dw_w, pw_w, pw_b, gamma, beta, rmean, rvar,
                             eps=1e-3, norm=True, activation=True))
    ref2 = _reference(x, dw_w, pw_w, pw_b, gamma, beta, rmean, rvar,
                      eps=1e-3, norm=True, activation=True)
    assert jnp.allclose(out2, ref2, atol=1e-4, rtol=1e-4), "mismatch (with swish)"

    # Two-step row tiling (the v7x megacore knob) must also be correct.
    out3 = jax.block_until_ready(
        separable_conv_block(x, dw_w, pw_w, pw_b, gamma, beta, rmean, rvar,
                             eps=1e-3, norm=True, activation=False, toh=H // 2))
    assert jnp.allclose(out3, ref, atol=1e-4, rtol=1e-4), "mismatch (toh=H//2)"

    print("KERNEL_OK")
</pallas_src>

<mosaic_0001>
module attributes {stable_mosaic.version = 11 : i64} {
  func.func @kernel(%arg0: i32, %arg1: memref<3x18x128xf32, #tpu.memory_space<vmem>>, %arg2: memref<9x128xf32, #tpu.memory_space<vmem>>, %arg3: memref<128x256xf32, #tpu.memory_space<vmem>>, %arg4: memref<1x256xf32, #tpu.memory_space<vmem>>, %arg5: memref<16x256xf32, #tpu.memory_space<vmem>>) attributes {dimension_semantics = [#tpu.dimension_semantics<parallel>], iteration_bounds = array<i64: 1>, scalar_prefetch = 0 : i64, scratch_operands = 0 : i64, tpu.core_type = #tpu.core_type<tc>, window_params = [{pipeline_mode = #tpu.pipeline_mode<synchronous>, transform_indices = @transform_0, window_bounds = array<i64: 3, 18, 128>}, {pipeline_mode = #tpu.pipeline_mode<synchronous>, transform_indices = @transform_1, window_bounds = array<i64: 9, 128>}, {pipeline_mode = #tpu.pipeline_mode<synchronous>, transform_indices = @transform_2, window_bounds = array<i64: 128, 256>}, {pipeline_mode = #tpu.pipeline_mode<synchronous>, transform_indices = @transform_3, window_bounds = array<i64: 1, 256>}, {transform_indices = @transform_4, window_bounds = array<i64: 16, 256>}]} {
    %c16_i32 = arith.constant 16 : i32
    %0 = arith.muli %arg0, %c16_i32 : i32
    %1 = tpu.assume_multiple %0, 16 : i32
    %c0 = arith.constant 0 : index
    %c0_0 = arith.constant 0 : index
    %2 = vector.load %arg2[%c0, %c0_0] : memref<9x128xf32, #tpu.memory_space<vmem>>, vector<9x128xf32>
    %c0_1 = arith.constant 0 : index
    %c0_2 = arith.constant 0 : index
    %3 = vector.load %arg4[%c0_1, %c0_2] : memref<1x256xf32, #tpu.memory_space<vmem>>, vector<1x256xf32>
    %cst = arith.constant 0.000000e+00 : f32
    %4 = vector.broadcast %cst : f32 to vector<16x128xf32>
    %c0_3 = arith.constant 0 : index
    %5 = arith.index_cast %1 : i32 to index
    %c0_4 = arith.constant 0 : index
    %6 = vector.load %arg1[%c0_3, %5, %c0_4] : memref<3x18x128xf32, #tpu.memory_space<vmem>>, vector<1x18x128xf32>
    %7 = vector.shape_cast %6 : vector<1x18x128xf32> to vector<18x128xf32>
    %8 = vector.extract_strided_slice %7 {offsets = [0, 0], sizes = [16, 128], strides = [1, 1]} : vector<18x128xf32> to vector<16x128xf32>
    %9 = vector.extract_strided_slice %2 {offsets = [0, 0], sizes = [1, 128], strides = [1, 1]} : vector<9x128xf32> to vector<1x128xf32>
    %10 = vector.broadcast %9 : vector<1x128xf32> to vector<16x128xf32>
    %11 = arith.mulf %8, %10 : vector<16x128xf32>
    %12 = arith.addf %4, %11 : vector<16x128xf32>
    %13 = vector.extract_strided_slice %7 {offsets = [1, 0], sizes = [16, 128], strides = [1, 1]} : vector<18x128xf32> to vector<16x128xf32>
    %14 = vector.extract_strided_slice %2 {offsets = [3, 0], sizes = [1, 128], strides = [1, 1]} : vector<9x128xf32> to vector<1x128xf32>
    %15 = vector.broadcast %14 : vector<1x128xf32> to vector<16x128xf32>
    %16 = arith.mulf %13, %15 : vector<16x128xf32>
    %17 = arith.addf %12, %16 : vector<16x128xf32>
    %18 = vector.extract_strided_slice %7 {offsets = [2, 0], sizes = [16, 128], strides = [1, 1]} : vector<18x128xf32> to vector<16x128xf32>
    %19 = vector.extract_strided_slice %2 {offsets = [6, 0], sizes = [1, 128], strides = [1, 1]} : vector<9x128xf32> to vector<1x128xf32>
    %20 = vector.broadcast %19 : vector<1x128xf32> to vector<16x128xf32>
    %21 = arith.mulf %18, %20 : vector<16x128xf32>
    %22 = arith.addf %17, %21 : vector<16x128xf32>
    %c1 = arith.constant 1 : index
    %23 = arith.index_cast %1 : i32 to index
    %c0_5 = arith.constant 0 : index
    %24 = vector.load %arg1[%c1, %23, %c0_5] : memref<3x18x128xf32, #tpu.memory_space<vmem>>, vector<1x18x128xf32>
    %25 = vector.shape_cast %24 : vector<1x18x128xf32> to vector<18x128xf32>
    %26 = vector.extract_strided_slice %25 {offsets = [0, 0], sizes = [16, 128], strides = [1, 1]} : vector<18x128xf32> to vector<16x128xf32>
    %27 = vector.extract_strided_slice %2 {offsets = [1, 0], sizes = [1, 128], strides = [1, 1]} : vector<9x128xf32> to vector<1x128xf32>
    %28 = vector.broadcast %27 : vector<1x128xf32> to vector<16x128xf32>
    %29 = arith.mulf %26, %28 : vector<16x128xf32>
    %30 = arith.addf %22, %29 : vector<16x128xf32>
    %31 = vector.extract_strided_slice %25 {offsets = [1, 0], sizes = [16, 128], strides = [1, 1]} : vector<18x128xf32> to vector<16x128xf32>
    %32 = vector.extract_strided_slice %2 {offsets = [4, 0], sizes = [1, 128], strides = [1, 1]} : vector<9x128xf32> to vector<1x128xf32>
    %33 = vector.broadcast %32 : vector<1x128xf32> to vector<16x128xf32>
    %34 = arith.mulf %31, %33 : vector<16x128xf32>
    %35 = arith.addf %30, %34 : vector<16x128xf32>
    %36 = vector.extract_strided_slice %25 {offsets = [2, 0], sizes = [16, 128], strides = [1, 1]} : vector<18x128xf32> to vector<16x128xf32>
    %37 = vector.extract_strided_slice %2 {offsets = [7, 0], sizes = [1, 128], strides = [1, 1]} : vector<9x128xf32> to vector<1x128xf32>
    %38 = vector.broadcast %37 : vector<1x128xf32> to vector<16x128xf32>
    %39 = arith.mulf %36, %38 : vector<16x128xf32>
    %40 = arith.addf %35, %39 : vector<16x128xf32>
    %c2 = arith.constant 2 : index
    %41 = arith.index_cast %1 : i32 to index
    %c0_6 = arith.constant 0 : index
    %42 = vector.load %arg1[%c2, %41, %c0_6] : memref<3x18x128xf32, #tpu.memory_space<vmem>>, vector<1x18x128xf32>
    %43 = vector.shape_cast %42 : vector<1x18x128xf32> to vector<18x128xf32>
    %44 = vector.extract_strided_slice %43 {offsets = [0, 0], sizes = [16, 128], strides = [1, 1]} : vector<18x128xf32> to vector<16x128xf32>
    %45 = vector.extract_strided_slice %2 {offsets = [2, 0], sizes = [1, 128], strides = [1, 1]} : vector<9x128xf32> to vector<1x128xf32>
    %46 = vector.broadcast %45 : vector<1x128xf32> to vector<16x128xf32>
    %47 = arith.mulf %44, %46 : vector<16x128xf32>
    %48 = arith.addf %40, %47 : vector<16x128xf32>
    %49 = vector.extract_strided_slice %43 {offsets = [1, 0], sizes = [16, 128], strides = [1, 1]} : vector<18x128xf32> to vector<16x128xf32>
    %50 = vector.extract_strided_slice %2 {offsets = [5, 0], sizes = [1, 128], strides = [1, 1]} : vector<9x128xf32> to vector<1x128xf32>
    %51 = vector.broadcast %50 : vector<1x128xf32> to vector<16x128xf32>
    %52 = arith.mulf %49, %51 : vector<16x128xf32>
    %53 = arith.addf %48, %52 : vector<16x128xf32>
    %54 = vector.extract_strided_slice %43 {offsets = [2, 0], sizes = [16, 128], strides = [1, 1]} : vector<18x128xf32> to vector<16x128xf32>
    %55 = vector.extract_strided_slice %2 {offsets = [8, 0], sizes = [1, 128], strides = [1, 1]} : vector<9x128xf32> to vector<1x128xf32>
    %56 = vector.broadcast %55 : vector<1x128xf32> to vector<16x128xf32>
    %57 = arith.mulf %54, %56 : vector<16x128xf32>
    %58 = arith.addf %53, %57 : vector<16x128xf32>
    %c0_7 = arith.constant 0 : index
    %c0_8 = arith.constant 0 : index
    %59 = vector.load %arg3[%c0_7, %c0_8] : memref<128x256xf32, #tpu.memory_space<vmem>>, vector<128x256xf32>
    %cst_9 = arith.constant dense<0.000000e+00> : vector<16x256xf32>
    %60 = tpu.matmul %58, %59, %cst_9 {dimension_numbers = #tpu.dot_dimension_numbers<[1], [0], [0], [1], [0, 0, 1, 1], [], []>} : vector<16x128xf32>, vector<128x256xf32>, vector<16x256xf32> -> vector<16x256xf32>
    %61 = vector.broadcast %3 : vector<1x256xf32> to vector<16x256xf32>
    %62 = arith.addf %60, %61 : vector<16x256xf32>
    %c0_10 = arith.constant 0 : index
    %c0_11 = arith.constant 0 : index
    %63 = vector.load %arg5[%c0_10, %c0_11] : memref<16x256xf32, #tpu.memory_space<vmem>>, vector<16x256xf32>
    tpu.vector_store %arg5[%c0_10, %c0_11], %62 {strides = array<i32>} : memref<16x256xf32, #tpu.memory_space<vmem>>, vector<16x256xf32>,
    return
  }
  func.func @transform_0(%arg0: i32) -> (i32, i32, i32) {
    %c0_i32 = arith.constant 0 : i32
    %c0_i32_0 = arith.constant 0 : i32
    %c0_i32_1 = arith.constant 0 : i32
    %c0_i32_2 = arith.constant 0 : i32
    return %c0_i32, %c0_i32_0, %c0_i32_1 : i32, i32, i32
  }
  func.func @transform_1(%arg0: i32) -> (i32, i32) {
    %c0_i32 = arith.constant 0 : i32
    %c0_i32_0 = arith.constant 0 : i32
    %c0_i32_1 = arith.constant 0 : i32
    return %c0_i32, %c0_i32_0 : i32, i32
  }
  func.func @transform_2(%arg0: i32) -> (i32, i32) {
    %c0_i32 = arith.constant 0 : i32
    %c0_i32_0 = arith.constant 0 : i32
    %c0_i32_1 = arith.constant 0 : i32
    return %c0_i32, %c0_i32_0 : i32, i32
  }
  func.func @transform_3(%arg0: i32) -> (i32, i32) {
    %c0_i32 = arith.constant 0 : i32
    %c0_i32_0 = arith.constant 0 : i32
    %c0_i32_1 = arith.constant 0 : i32
    return %c0_i32, %c0_i32_0 : i32, i32
  }
  func.func @transform_4(%arg0: i32) -> (i32, i32) {
    %c0_i32 = arith.constant 0 : i32
    %c0_i32_0 = arith.constant 0 : i32
    return %arg0, %c0_i32 : i32, i32
  }
}

module attributes {stable_mosaic.version = 11 : i64} {
  func.func @kernel(%arg0: i32, %arg1: memref<3x18x128xf32, #tpu.memory_space<vmem>>, %arg2: memref<9x128xf32, #tpu.memory_space<vmem>>, %arg3: memref<128x256xf32, #tpu.memory_space<vmem>>, %arg4: memref<1x256xf32, #tpu.memory_space<vmem>>, %arg5: memref<16x256xf32, #tpu.memory_space<vmem>>) attributes {dimension_semantics = [#tpu.dimension_semantics<parallel>], iteration_bounds = array<i64: 1>, scalar_prefetch = 0 : i64, scratch_operands = 0 : i64, tpu.core_type = #tpu.core_type<tc>, window_params = [{pipeline_mode = #tpu.pipeline_mode<synchronous>, transform_indices = @transform_0, window_bounds = array<i64: 3, 18, 128>}, {pipeline_mode = #tpu.pipeline_mode<synchronous>, transform_indices = @transform_1, window_bounds = array<i64: 9, 128>}, {pipeline_mode = #tpu.pipeline_mode<synchronous>, transform_indices = @transform_2, window_bounds = array<i64: 128, 256>}, {pipeline_mode = #tpu.pipeline_mode<synchronous>, transform_indices = @transform_3, window_bounds = array<i64: 1, 256>}, {transform_indices = @transform_4, window_bounds = array<i64: 16, 256>}]} {
    %c16_i32 = arith.constant 16 : i32
    %0 = arith.muli %arg0, %c16_i32 : i32
    %1 = tpu.assume_multiple %0, 16 : i32
    %c0 = arith.constant 0 : index
    %c0_0 = arith.constant 0 : index
    %2 = vector.load %arg2[%c0, %c0_0] : memref<9x128xf32, #tpu.memory_space<vmem>>, vector<9x128xf32>
    %c0_1 = arith.constant 0 : index
    %c0_2 = arith.constant 0 : index
    %3 = vector.load %arg4[%c0_1, %c0_2] : memref<1x256xf32, #tpu.memory_space<vmem>>, vector<1x256xf32>
    %cst = arith.constant 0.000000e+00 : f32
    %4 = vector.broadcast %cst : f32 to vector<16x128xf32>
    %c0_3 = arith.constant 0 : index
    %5 = arith.index_cast %1 : i32 to index
    %c0_4 = arith.constant 0 : index
    %6 = vector.load %arg1[%c0_3, %5, %c0_4] : memref<3x18x128xf32, #tpu.memory_space<vmem>>, vector<1x18x128xf32>
    %7 = vector.shape_cast %6 : vector<1x18x128xf32> to vector<18x128xf32>
    %8 = vector.extract_strided_slice %7 {offsets = [0, 0], sizes = [16, 128], strides = [1, 1]} : vector<18x128xf32> to vector<16x128xf32>
    %9 = vector.extract_strided_slice %2 {offsets = [0, 0], sizes = [1, 128], strides = [1, 1]} : vector<9x128xf32> to vector<1x128xf32>
    %10 = vector.broadcast %9 : vector<1x128xf32> to vector<16x128xf32>
    %11 = arith.mulf %8, %10 : vector<16x128xf32>
    %12 = arith.addf %4, %11 : vector<16x128xf32>
    %13 = vector.extract_strided_slice %7 {offsets = [1, 0], sizes = [16, 128], strides = [1, 1]} : vector<18x128xf32> to vector<16x128xf32>
    %14 = vector.extract_strided_slice %2 {offsets = [3, 0], sizes = [1, 128], strides = [1, 1]} : vector<9x128xf32> to vector<1x128xf32>
    %15 = vector.broadcast %14 : vector<1x128xf32> to vector<16x128xf32>
    %16 = arith.mulf %13, %15 : vector<16x128xf32>
    %17 = arith.addf %12, %16 : vector<16x128xf32>
    %18 = vector.extract_strided_slice %7 {offsets = [2, 0], sizes = [16, 128], strides = [1, 1]} : vector<18x128xf32> to vector<16x128xf32>
    %19 = vector.extract_strided_slice %2 {offsets = [6, 0], sizes = [1, 128], strides = [1, 1]} : vector<9x128xf32> to vector<1x128xf32>
    %20 = vector.broadcast %19 : vector<1x128xf32> to vector<16x128xf32>
    %21 = arith.mulf %18, %20 : vector<16x128xf32>
    %22 = arith.addf %17, %21 : vector<16x128xf32>
    %c1 = arith.constant 1 : index
    %23 = arith.index_cast %1 : i32 to index
    %c0_5 = arith.constant 0 : index
    %24 = vector.load %arg1[%c1, %23, %c0_5] : memref<3x18x128xf32, #tpu.memory_space<vmem>>, vector<1x18x128xf32>
    %25 = vector.shape_cast %24 : vector<1x18x128xf32> to vector<18x128xf32>
    %26 = vector.extract_strided_slice %25 {offsets = [0, 0], sizes = [16, 128], strides = [1, 1]} : vector<18x128xf32> to vector<16x128xf32>
    %27 = vector.extract_strided_slice %2 {offsets = [1, 0], sizes = [1, 128], strides = [1, 1]} : vector<9x128xf32> to vector<1x128xf32>
    %28 = vector.broadcast %27 : vector<1x128xf32> to vector<16x128xf32>
    %29 = arith.mulf %26, %28 : vector<16x128xf32>
    %30 = arith.addf %22, %29 : vector<16x128xf32>
    %31 = vector.extract_strided_slice %25 {offsets = [1, 0], sizes = [16, 128], strides = [1, 1]} : vector<18x128xf32> to vector<16x128xf32>
    %32 = vector.extract_strided_slice %2 {offsets = [4, 0], sizes = [1, 128], strides = [1, 1]} : vector<9x128xf32> to vector<1x128xf32>
    %33 = vector.broadcast %32 : vector<1x128xf32> to vector<16x128xf32>
    %34 = arith.mulf %31, %33 : vector<16x128xf32>
    %35 = arith.addf %30, %34 : vector<16x128xf32>
    %36 = vector.extract_strided_slice %25 {offsets = [2, 0], sizes = [16, 128], strides = [1, 1]} : vector<18x128xf32> to vector<16x128xf32>
    %37 = vector.extract_strided_slice %2 {offsets = [7, 0], sizes = [1, 128], strides = [1, 1]} : vector<9x128xf32> to vector<1x128xf32>
    %38 = vector.broadcast %37 : vector<1x128xf32> to vector<16x128xf32>
    %39 = arith.mulf %36, %38 : vector<16x128xf32>
    %40 = arith.addf %35, %39 : vector<16x128xf32>
    %c2 = arith.constant 2 : index
    %41 = arith.index_cast %1 : i32 to index
    %c0_6 = arith.constant 0 : index
    %42 = vector.load %arg1[%c2, %41, %c0_6] : memref<3x18x128xf32, #tpu.memory_space<vmem>>, vector<1x18x128xf32>
    %43 = vector.shape_cast %42 : vector<1x18x128xf32> to vector<18x128xf32>
    %44 = vector.extract_strided_slice %43 {offsets = [0, 0], sizes = [16, 128], strides = [1, 1]} : vector<18x128xf32> to vector<16x128xf32>
    %45 = vector.extract_strided_slice %2 {offsets = [2, 0], sizes = [1, 128], strides = [1, 1]} : vector<9x128xf32> to vector<1x128xf32>
    %46 = vector.broadcast %45 : vector<1x128xf32> to vector<16x128xf32>
    %47 = arith.mulf %44, %46 : vector<16x128xf32>
    %48 = arith.addf %40, %47 : vector<16x128xf32>
    %49 = vector.extract_strided_slice %43 {offsets = [1, 0], sizes = [16, 128], strides = [1, 1]} : vector<18x128xf32> to vector<16x128xf32>
    %50 = vector.extract_strided_slice %2 {offsets = [5, 0], sizes = [1, 128], strides = [1, 1]} : vector<9x128xf32> to vector<1x128xf32>
    %51 = vector.broadcast %50 : vector<1x128xf32> to vector<16x128xf32>
    %52 = arith.mulf %49, %51 : vector<16x128xf32>
    %53 = arith.addf %48, %52 : vector<16x128xf32>
    %54 = vector.extract_strided_slice %43 {offsets = [2, 0], sizes = [16, 128], strides = [1, 1]} : vector<18x128xf32> to vector<16x128xf32>
    %55 = vector.extract_strided_slice %2 {offsets = [8, 0], sizes = [1, 128], strides = [1, 1]} : vector<9x128xf32> to vector<1x128xf32>
    %56 = vector.broadcast %55 : vector<1x128xf32> to vector<16x128xf32>
    %57 = arith.mulf %54, %56 : vector<16x128xf32>
    %58 = arith.addf %53, %57 : vector<16x128xf32>
    %c0_7 = arith.constant 0 : index
    %c0_8 = arith.constant 0 : index
    %59 = vector.load %arg3[%c0_7, %c0_8] : memref<128x256xf32, #tpu.memory_space<vmem>>, vector<128x256xf32>
    %cst_9 = arith.constant dense<0.000000e+00> : vector<16x256xf32>
    %60 = tpu.matmul %58, %59, %cst_9 {dimension_numbers = #tpu.dot_dimension_numbers<[1], [0], [0], [1], [0, 0, 1, 1], [], []>} : vector<16x128xf32>, vector<128x256xf32>, vector<16x256xf32> -> vector<16x256xf32>
    %61 = vector.broadcast %3 : vector<1x256xf32> to vector<16x256xf32>
    %62 = arith.addf %60, %61 : vector<16x256xf32>
    %c0_10 = arith.constant 0 : index
    %c0_11 = arith.constant 0 : index
    %63 = vector.load %arg5[%c0_10, %c0_11] : memref<16x256xf32, #tpu.memory_space<vmem>>, vector<16x256xf32>
    tpu.vector_store %arg5[%c0_10, %c0_11], %62 {strides = array<i32>} : memref<16x256xf32, #tpu.memory_space<vmem>>, vector<16x256xf32>,
    return
  }
  func.func @transform_0(%arg0: i32) -> (i32, i32, i32) {
    %c0_i32 = arith.constant 0 : i32
    %c0_i32_0 = arith.constant 0 : i32
    %c0_i32_1 = arith.constant 0 : i32
    %c0_i32_2 = arith.constant 0 : i32
    return %c0_i32, %c0_i32_0, %c0_i32_1 : i32, i32, i32
  }
  func.func @transform_1(%arg0: i32) -> (i32, i32) {
    %c0_i32 = arith.constant 0 : i32
    %c0_i32_0 = arith.constant 0 : i32
    %c0_i32_1 = arith.constant 0 : i32
    return %c0_i32, %c0_i32_0 : i32, i32
  }
  func.func @transform_2(%arg0: i32) -> (i32, i32) {
    %c0_i32 = arith.constant 0 : i32
    %c0_i32_0 = arith.constant 0 : i32
    %c0_i32_1 = arith.constant 0 : i32
    return %c0_i32, %c0_i32_0 : i32, i32
  }
  func.func @transform_3(%arg0: i32) -> (i32, i32) {
    %c0_i32 = arith.constant 0 : i32
    %c0_i32_0 = arith.constant 0 : i32
    %c0_i32_1 = arith.constant 0 : i32
    return %c0_i32, %c0_i32_0 : i32, i32
  }
  func.func @transform_4(%arg0: i32) -> (i32, i32) {
    %c0_i32 = arith.constant 0 : i32
    %c0_i32_0 = arith.constant 0 : i32
    return %arg0, %c0_i32 : i32, i32
  }
}

</mosaic_0001>

<llo_original>
// kernel: tpu_custom_call.1
$region0: #{tpu_custom_call.1}
  #allocation0 [shape = 'u32[]', space=smem, size = 0x4, offset = 0x4, fixed_abs, tag = 'smem constant byte address 0x4 - core index']
  #allocation1 [shape = 'u32[144,128]{1,0:T(1,128)}', space=vmem, size = 0x12000, scoped, tag = 'internal scratch']
  %s0 = inlined_call_operand.hbm [shape: f32[3,18,128], index: 0, kind: input, shape index: {}]
  %s1 = inlined_call_operand.hbm [shape: f32[9,128], index: 1, kind: input, shape index: {}]
  %s2 = inlined_call_operand.hbm [shape: f32[128,256], index: 2, kind: input, shape index: {}]
  %s3 = inlined_call_operand.vmem [shape: f32[1,256], index: 3, kind: input, shape index: {}]
  %s4 = inlined_call_operand.hbm [shape: f32[16,256], index: 4, kind: output, shape index: {}]
  %s5 = sld [smem:[#allocation0]]
  $region38: #{tpu_custom_call.1} parent=0
    _
  %s7 = ssub.s32 1, %s5
  %s8 = scalar_select 0, %s7, %s5
  $region1: #{tpu_custom_call.1} parent=0
    #allocation2 [shape = 'u8[36864]{0}', space=vmem, size = 0x9000, scoped, tag = 'input window, operand 0, single buffered']
    #allocation3 [shape = 's32[1]{0}', space=sflag, size = 0x4, scoped, tag = 'scoped memory for tpu_custom_call.1']
    #allocation4 [shape = 's32[1]{0}', space=sflag, size = 0x4, scoped, tag = 'scoped memory for tpu_custom_call.1']
    #allocation5 [shape = 'u8[8192]{0}', space=vmem, size = 0x2000, scoped, tag = 'input window, operand 1, single buffered']
    #allocation6 [shape = 's32[1]{0}', space=sflag, size = 0x4, scoped, tag = 'scoped memory for tpu_custom_call.1']
    #allocation7 [shape = 'u8[131072]{0}', space=vmem, size = 0x20000, scoped, tag = 'input window, operand 2, single buffered']
    #allocation8 [shape = 'u8[16384]{0}', space=vmem, size = 0x4000, scoped, tag = 'output window, operand 0, single buffered']
    %9 = vsyncpa [#allocation3], 0
    %10 = vsyncpa [#allocation6], 0
    %11 = vsyncpa [#allocation4], 0
    // Predicated region
    $region2: #{tpu_custom_call.1} parent=1 // pred_check
      _
    $region3: #{tpu_custom_call.1} parent=1 // pred_check_branch
      %13 = sbr.rel (0) target = $region5
    $region4: #{tpu_custom_call.1} parent=1 // pred_region
      %s15 = ssub.s32 1152, 1152
      %16 = vsyncadd [#allocation3], %s15
      %s17 = sshll.u32 [#allocation2], 4
      %s18 = int_to_ptr.vmem [resolvable:$true] %s17
      %23 = dma.hbm_to_vmem [thread:$0]  %s0, 1152, %s18, [#allocation3], 128, 128, 8
    $region5: #{tpu_custom_call.1} parent=1 // pred_fallthru
      _
    // Predicated region
    $region6: #{tpu_custom_call.1} parent=1 // pred_check
      _
    $region7: #{tpu_custom_call.1} parent=1 // pred_check_branch
      %25 = sbr.rel (0) target = $region9
    $region8: #{tpu_custom_call.1} parent=1 // pred_region
      %s27 = ssub.s32 256, 256
      %28 = vsyncadd [#allocation6], %s27
      %s29 = sshll.u32 [#allocation5], 4
      %s30 = int_to_ptr.vmem [resolvable:$true] %s29
      %35 = dma.hbm_to_vmem [thread:$0]  %s1, 256, %s30, [#allocation6], 128, 128, 8
    $region9: #{tpu_custom_call.1} parent=1 // pred_fallthru
      _
    // Predicated region
    $region10: #{tpu_custom_call.1} parent=1 // pred_check
      _
    $region11: #{tpu_custom_call.1} parent=1 // pred_check_branch
      %37 = sbr.rel (0) target = $region13
    $region12: #{tpu_custom_call.1} parent=1 // pred_region
      %s39 = ssub.s32 4096, 4096
      %40 = vsyncadd [#allocation6], %s39
      %s41 = sshll.u32 [#allocation7], 4
      %s42 = int_to_ptr.vmem [resolvable:$true] %s41
      %47 = dma.hbm_to_vmem [thread:$0]  %s2, 4096, %s42, [#allocation6], 256, 256, 16
    $region13: #{tpu_custom_call.1} parent=1 // pred_fallthru
      _
    // Predicated region
    $region14: #{tpu_custom_call.1} parent=1 // pred_check
      _
    $region15: #{tpu_custom_call.1} parent=1 // pred_check_branch
      %49 = sbr.rel (0) target = $region17
    $region16: #{tpu_custom_call.1} parent=1 // pred_region
      _
    $region17: #{tpu_custom_call.1} parent=1 // pred_fallthru
      _
    // Predicated region
    $region18: #{tpu_custom_call.1} parent=1 // pred_check
      _
    $region19: #{tpu_custom_call.1} parent=1 // pred_check_branch
      %51 = sbr.rel (0) target = $region21
    $region20: #{tpu_custom_call.1} parent=1 // pred_region
      %52 = dma.done [#allocation3], 1152
    $region21: #{tpu_custom_call.1} parent=1 // pred_fallthru
      _
    // Predicated region
    $region22: #{tpu_custom_call.1} parent=1 // pred_check
      _
    $region23: #{tpu_custom_call.1} parent=1 // pred_check_branch
      %54 = sbr.rel (0) target = $region25
    $region24: #{tpu_custom_call.1} parent=1 // pred_region
      %55 = dma.done [#allocation6], 256
    $region25: #{tpu_custom_call.1} parent=1 // pred_fallthru
      _
    // Predicated region
    $region26: #{tpu_custom_call.1} parent=1 // pred_check
      _
    $region27: #{tpu_custom_call.1} parent=1 // pred_check_branch
      %57 = sbr.rel (0) target = $region29
    $region28: #{tpu_custom_call.1} parent=1 // pred_region
      %58 = dma.done [#allocation6], 4096
    $region29: #{tpu_custom_call.1} parent=1 // pred_fallthru
      _
    %s59 = smul.u32 0, 16
    %v60 = vld [vmem:[#allocation5] sm:$0xff]
    %v61 = vld [vmem:[#allocation5 + $0x8] sm:$0x1]
    %v62 = vld [vmem:[%s3] sm:$0x3]
    %s63 = scalar_lea.vmem [#allocation2], %s59
    %v64 = vld [vmem:[%s63] sm:$0xff]
    %v65 = vld [vmem:[%s63 + $0x8] sm:$0xff]
    %v66 = vld [vmem:[%s63 + $0x10] sm:$0x3]
    %v67 = vlaneseq
    %v68 = vshrl.u32 %v67, 7
    %v69 = vsub.s32 0, %v68
    %v70 = vrot.slane %v60, %v69
    %v71 = vmul.f32 %v64, %v70
    %v72 = vmul.f32 %v65, %v70
    %v73 = vadd.f32 %v71, 0.0
    %v74 = vadd.f32 %v72, 0.0
    %v75 = vlaneseq
    %v76 = vshrl.u32 %v75, 7
    %v77 = vsub.s32 3, %v76
    %v78 = vrot.slane %v60, %v77
    %v79 = vmul.f32 %v64, %v78
    %v80 = vmul.f32 %v65, %v78
    %v81 = vmul.f32 %v66, %v78
    %vm85 = vcmask 1046528
    %v86 = vrot.slane %v79, 1
    %v87 = vrot.slane %v80, 1
    %v88 = vsel %vm85, %v86, %v87
    %v89 = vrot.slane %v81, 1
    %v90 = vsel %vm85, %v87, %v89
    %v93 = vadd.f32 %v73, %v88
    %v94 = vadd.f32 %v74, %v90
    %v95 = vlaneseq
    %v96 = vshrl.u32 %v95, 7
    %v97 = vsub.s32 6, %v96
    %v98 = vrot.slane %v60, %v97
    %v99 = vmul.f32 %v64, %v98
    %v100 = vmul.f32 %v65, %v98
    %v101 = vmul.f32 %v66, %v98
    %vm105 = vcmask 1045504
    %v106 = vrot.slane %v99, 2
    %v107 = vrot.slane %v100, 2
    %v108 = vsel %vm105, %v106, %v107
    %v109 = vrot.slane %v101, 2
    %v110 = vsel %vm105, %v107, %v109
    %v113 = vadd.f32 %v93, %v108
    %v114 = vadd.f32 %v94, %v110
    %s115 = sadd.s32 %s59, 24
    %s116 = scalar_lea.vmem [#allocation2], %s115
    %v117 = vld [vmem:[%s116] sm:$0xff]
    %v118 = vld [vmem:[%s116 + $0x8] sm:$0xff]
    %v119 = vld [vmem:[%s116 + $0x10] sm:$0x3]
    %v120 = vlaneseq
    %v121 = vshrl.u32 %v120, 7
    %v122 = vsub.s32 1, %v121
    %v123 = vrot.slane %v60, %v122
    %v124 = vmul.f32 %v117, %v123
    %v125 = vmul.f32 %v118, %v123
    %v126 = vadd.f32 %v113, %v124
    %v127 = vadd.f32 %v114, %v125
    %v128 = vlaneseq
    %v129 = vshrl.u32 %v128, 7
    %v130 = vsub.s32 4, %v129
    %v131 = vrot.slane %v60, %v130
    %v132 = vmul.f32 %v117, %v131
    %v133 = vmul.f32 %v118, %v131
    %v134 = vmul.f32 %v119, %v131
    %v138 = vrot.slane %v132, 1
    %v139 = vrot.slane %v133, 1
    %v140 = vsel %vm85, %v138, %v139
    %v141 = vrot.slane %v134, 1
    %v142 = vsel %vm85, %v139, %v141
    %v145 = vadd.f32 %v126, %v140
    %v146 = vadd.f32 %v127, %v142
    %v147 = vlaneseq
    %v148 = vshrl.u32 %v147, 7
    %v149 = vsub.s32 7, %v148
    %v150 = vrot.slane %v60, %v149
    %v151 = vmul.f32 %v117, %v150
    %v152 = vmul.f32 %v118, %v150
    %v153 = vmul.f32 %v119, %v150
    %v157 = vrot.slane %v151, 2
    %v158 = vrot.slane %v152, 2
    %v159 = vsel %vm105, %v157, %v158
    %v160 = vrot.slane %v153, 2
    %v161 = vsel %vm105, %v158, %v160
    %v164 = vadd.f32 %v145, %v159
    %v165 = vadd.f32 %v146, %v161
    %s166 = sadd.s32 %s59, 48
    %s167 = scalar_lea.vmem [#allocation2], %s166
    %v168 = vld [vmem:[%s167] sm:$0xff]
    %v169 = vld [vmem:[%s167 + $0x8] sm:$0xff]
    %v170 = vld [vmem:[%s167 + $0x10] sm:$0x3]
    %v171 = vlaneseq
    %v172 = vshrl.u32 %v171, 7
    %v173 = vsub.s32 2, %v172
    %v174 = vrot.slane %v60, %v173
    %v175 = vmul.f32 %v168, %v174
    %v176 = vmul.f32 %v169, %v174
    %v177 = vadd.f32 %v164, %v175
    %v178 = vadd.f32 %v165, %v176
    %v179 = vlaneseq
    %v180 = vshrl.u32 %v179, 7
    %v181 = vsub.s32 5, %v180
    %v182 = vrot.slane %v60, %v181
    %v183 = vmul.f32 %v168, %v182
    %v184 = vmul.f32 %v169, %v182
    %v185 = vmul.f32 %v170, %v182
    %v189 = vrot.slane %v183, 1
    %v190 = vrot.slane %v184, 1
    %v191 = vsel %vm85, %v189, %v190
    %v192 = vrot.slane %v185, 1
    %v193 = vsel %vm85, %v190, %v192
    %v196 = vadd.f32 %v177, %v191
    %v197 = vadd.f32 %v178, %v193
    %v198 = vlaneseq
    %v199 = vshrl.u32 %v198, 7
    %v200 = vsub.s32 0, %v199
    %v201 = vrot.slane %v61, %v200
    %v202 = vmul.f32 %v168, %v201
    %v203 = vmul.f32 %v169, %v201
    %v204 = vmul.f32 %v170, %v201
    %v208 = vrot.slane %v202, 2
    %v209 = vrot.slane %v203, 2
    %v210 = vsel %vm105, %v208, %v209
    %v211 = vrot.slane %v204, 2
    %v212 = vsel %vm105, %v209, %v211
    %v215 = vadd.f32 %v196, %v210
    %v216 = vadd.f32 %v197, %v212
    %v217 = vld [vmem:[#allocation7] sm:$0xff]
    %v218 = vld [vmem:[#allocation7 + $0x8] sm:$0xff]
    %v219 = vld [vmem:[#allocation7 + $0x10] sm:$0xff]
    %v220 = vld [vmem:[#allocation7 + $0x18] sm:$0xff]
    %v221 = vld [vmem:[#allocation7 + $0x20] sm:$0xff]
    %v222 = vld [vmem:[#allocation7 + $0x28] sm:$0xff]
    %v223 = vld [vmem:[#allocation7 + $0x30] sm:$0xff]
    %v224 = vld [vmem:[#allocation7 + $0x38] sm:$0xff]
    %v225 = vld [vmem:[#allocation7 + $0x40] sm:$0xff]
    %v226 = vld [vmem:[#allocation7 + $0x48] sm:$0xff]
    %v227 = vld [vmem:[#allocation7 + $0x50] sm:$0xff]
    %v228 = vld [vmem:[#allocation7 + $0x58] sm:$0xff]
    %v229 = vld [vmem:[#allocation7 + $0x60] sm:$0xff]
    %v230 = vld [vmem:[#allocation7 + $0x68] sm:$0xff]
    %v231 = vld [vmem:[#allocation7 + $0x70] sm:$0xff]
    %v232 = vld [vmem:[#allocation7 + $0x78] sm:$0xff]
    %v233 = vld [vmem:[#allocation7 + $0x80] sm:$0xff]
    %v234 = vld [vmem:[#allocation7 + $0x88] sm:$0xff]
    %v235 = vld [vmem:[#allocation7 + $0x90] sm:$0xff]
    %v236 = vld [vmem:[#allocation7 + $0x98] sm:$0xff]
    %v237 = vld [vmem:[#allocation7 + $0xa0] sm:$0xff]
    %v238 = vld [vmem:[#allocation7 + $0xa8] sm:$0xff]
    %v239 = vld [vmem:[#allocation7 + $0xb0] sm:$0xff]
    %v240 = vld [vmem:[#allocation7 + $0xb8] sm:$0xff]
    %v241 = vld [vmem:[#allocation7 + $0xc0] sm:$0xff]
    %v242 = vld [vmem:[#allocation7 + $0xc8] sm:$0xff]
    %v243 = vld [vmem:[#allocation7 + $0xd0] sm:$0xff]
    %v244 = vld [vmem:[#allocation7 + $0xd8] sm:$0xff]
    %v245 = vld [vmem:[#allocation7 + $0xe0] sm:$0xff]
    %v246 = vld [vmem:[#allocation7 + $0xe8] sm:$0xff]
    %v247 = vld [vmem:[#allocation7 + $0xf0] sm:$0xff]
    %v248 = vld [vmem:[#allocation7 + $0xf8] sm:$0xff]
    %v250 = vlaneseq
    %v251 = vshrl.u32 %v250, 7
    %v252 = vsub.s32 0, %v251
    %v253 = vrot.slane %v62, %v252
    %v254 = vlaneseq
    %v255 = vshrl.u32 %v254, 7
    %v256 = vsub.s32 1, %v255
    %v257 = vrot.slane %v62, %v256
    %260 = vmatprep.subr.mxu0 %v248
    %261 = vmatpush1.msra.mxu0 %v247
    %262 = vmatprep.subr.mxu0 %v246
    %263 = vmatpush1.msra.mxu0 %v245
    %264 = vmatprep.subr.mxu0 %v244
    %265 = vmatpush1.msra.mxu0 %v243
    %266 = vmatprep.subr.mxu0 %v242
    %267 = vmatpush1.msra.mxu0 %v241
    %268 = vmatprep.subr.mxu0 %v240
    %269 = vmatpush1.msra.mxu0 %v239
    %270 = vmatprep.subr.mxu0 %v238
    %271 = vmatpush1.msra.mxu0 %v237
    %272 = vmatprep.subr.mxu0 %v236
    %273 = vmatpush1.msra.mxu0 %v235
    %274 = vmatprep.subr.mxu0 %v234
    %275 = vmatpush1.msra.mxu0 %v233
    %276 = vmatprep.subr.mxu0 %v232
    %277 = vmatpush1.msra.mxu0 %v231
    %278 = vmatprep.subr.mxu0 %v230
    %279 = vmatpush1.msra.mxu0 %v229
    %280 = vmatprep.subr.mxu0 %v228
    %281 = vmatpush1.msra.mxu0 %v227
    %282 = vmatprep.subr.mxu0 %v226
    %283 = vmatpush1.msra.mxu0 %v225
    %284 = vmatprep.subr.mxu0 %v224
    %285 = vmatpush1.msra.mxu0 %v223
    %286 = vmatprep.subr.mxu0 %v222
    %287 = vmatpush1.msra.mxu0 %v221
    %288 = vmatprep.subr.mxu0 %v220
    %289 = vmatpush1.msra.mxu0 %v219
    %290 = vmatprep.subr.mxu0 %v218
    %291 = vmatpush1.msra.mxu0 %v217
    %292 = vmatprep.subr.mxu0 0.0
    %293 = vmatpush2.msra.mxu0 0.0
    %294 = vmatprep.subr.mxu0 0.0
    %295 = vmatpush2.msra.mxu0 0.0
    %296 = vmatprep.subr.mxu0 0.0
    %297 = vmatpush2.msra.mxu0 0.0
    %298 = vmatprep.subr.mxu0 0.0
    %299 = vmatpush2.msra.mxu0 0.0
    %300 = vmatprep.subr.mxu0 0.0
    %301 = vmatpush2.msra.mxu0 0.0
    %302 = vmatprep.subr.mxu0 0.0
    %303 = vmatpush2.msra.mxu0 0.0
    %304 = vmatprep.subr.mxu0 0.0
    %305 = vmatpush2.msra.mxu0 0.0
    %306 = vmatprep.subr.mxu0 0.0
    %307 = vmatpush2.msra.mxu0 0.0
    %308 = vmatprep.subr.mxu0 0.0
    %309 = vmatpush2.msra.mxu0 0.0
    %310 = vmatprep.subr.mxu0 0.0
    %311 = vmatpush2.msra.mxu0 0.0
    %312 = vmatprep.subr.mxu0 0.0
    %313 = vmatpush2.msra.mxu0 0.0
    %314 = vmatprep.subr.mxu0 0.0
    %315 = vmatpush2.msra.mxu0 0.0
    %316 = vmatprep.subr.mxu0 0.0
    %317 = vmatpush2.msra.mxu0 0.0
    %318 = vmatprep.subr.mxu0 0.0
    %319 = vmatpush2.msra.mxu0 0.0
    %320 = vmatprep.subr.mxu0 0.0
    %321 = vmatpush2.msra.mxu0 0.0
    %322 = vmatprep.subr.mxu0 0.0
    %323 = vmatpush2.msra.mxu0 0.0
    %324 = vmatprep.mubr.f32.mxu0 0.0
    %325 = vmatmul.mubr.f32.gmra.mxu0 %v215
    %v326 = vpop.f32.mrf.mxu0
    %v327 = vadd.f32 %v253, %v326
    %v328 = vpop.f32.mrf.mxu0
    %v329 = vadd.f32 %v257, %v328
    %330 = vmatprep.mubr.f32.mxu0 0.0
    %331 = vmatmul.mubr.f32.gmra.mxu0 %v216
    %v332 = vpop.f32.mrf.mxu0
    %v333 = vadd.f32 %v253, %v332
    %v334 = vpop.f32.mrf.mxu0
    %v335 = vadd.f32 %v257, %v334
    %336 = vdwg.mxu0
    %337 = vst [vmem:[#allocation8] sm:$0xff] %v327
    %338 = vst [vmem:[#allocation8 + $0x8] sm:$0xff] %v329
    %339 = vst [vmem:[#allocation8 + $0x10] sm:$0xff] %v333
    %340 = vst [vmem:[#allocation8 + $0x18] sm:$0xff] %v335
    // Predicated region
    $region30: #{tpu_custom_call.1} parent=1 // pred_check
      _
    $region31: #{tpu_custom_call.1} parent=1 // pred_check_branch
      %342 = sbr.rel (0) target = $region33
    $region32: #{tpu_custom_call.1} parent=1 // pred_region
      %s344 = ssub.s32 512, 512
      %345 = vsyncadd [#allocation4], %s344
      %s346 = sshll.u32 [#allocation8], 4
      %s347 = int_to_ptr.vmem [resolvable:$true] %s346
      %352 = dma.vmem_to_hbm [thread:$0]  %s347, 512, %s4, [#allocation4], 256, 256, 16
    $region33: #{tpu_custom_call.1} parent=1 // pred_fallthru
      _
    // Predicated region
    $region34: #{tpu_custom_call.1} parent=1 // pred_check
      _
    $region35: #{tpu_custom_call.1} parent=1 // pred_check_branch
      %354 = sbr.rel (0) target = $region37
    $region36: #{tpu_custom_call.1} parent=1 // pred_region
      %355 = dma.done [#allocation4], 512
    $region37: #{tpu_custom_call.1} parent=1 // pred_fallthru
      _
    %356 = vsyncpa [#allocation3], 1
    %357 = vsyncpa [#allocation6], 1
    %358 = vsyncpa [#allocation4], 1

// kernel: tpu_custom_call.1
$region0: #{tpu_custom_call.1}
  #allocation0 [shape = 'u32[]', space=smem, size = 0x4, offset = 0x4, fixed_abs, tag = 'smem constant byte address 0x4 - core index']
  #allocation1 [shape = 'u32[144,128]{1,0:T(1,128)}', space=vmem, size = 0x12000, scoped, tag = 'internal scratch']
  %s0 = inlined_call_operand.hbm [shape: f32[3,18,128], index: 0, kind: input, shape index: {}]
  %s1 = inlined_call_operand.hbm [shape: f32[9,128], index: 1, kind: input, shape index: {}]
  %s2 = inlined_call_operand.hbm [shape: f32[128,256], index: 2, kind: input, shape index: {}]
  %s3 = inlined_call_operand.vmem [shape: f32[1,256], index: 3, kind: input, shape index: {}]
  %s4 = inlined_call_operand.hbm [shape: f32[16,256], index: 4, kind: output, shape index: {}]
  %s5 = sld [smem:[#allocation0]]
  $region38: #{tpu_custom_call.1} parent=0
    _
  %s7 = ssub.s32 1, %s5
  %s8 = scalar_select 0, %s7, %s5
  $region1: #{tpu_custom_call.1} parent=0
    #allocation2 [shape = 'u8[36864]{0}', space=vmem, size = 0x9000, scoped, tag = 'input window, operand 0, single buffered']
    #allocation3 [shape = 's32[1]{0}', space=sflag, size = 0x4, scoped, tag = 'scoped memory for tpu_custom_call.1']
    #allocation4 [shape = 's32[1]{0}', space=sflag, size = 0x4, scoped, tag = 'scoped memory for tpu_custom_call.1']
    #allocation5 [shape = 'u8[8192]{0}', space=vmem, size = 0x2000, scoped, tag = 'input window, operand 1, single buffered']
    #allocation6 [shape = 's32[1]{0}', space=sflag, size = 0x4, scoped, tag = 'scoped memory for tpu_custom_call.1']
    #allocation7 [shape = 'u8[131072]{0}', space=vmem, size = 0x20000, scoped, tag = 'input window, operand 2, single buffered']
    #allocation8 [shape = 'u8[16384]{0}', space=vmem, size = 0x4000, scoped, tag = 'output window, operand 0, single buffered']
    %9 = vsyncpa [#allocation3], 0
    %10 = vsyncpa [#allocation6], 0
    %11 = vsyncpa [#allocation4], 0
    // Predicated region
    $region2: #{tpu_custom_call.1} parent=1 // pred_check
      _
    $region3: #{tpu_custom_call.1} parent=1 // pred_check_branch
      %13 = sbr.rel (0) target = $region5
    $region4: #{tpu_custom_call.1} parent=1 // pred_region
      %s15 = ssub.s32 1152, 1152
      %16 = vsyncadd [#allocation3], %s15
      %s17 = sshll.u32 [#allocation2], 4
      %s18 = int_to_ptr.vmem [resolvable:$true] %s17
      %23 = dma.hbm_to_vmem [thread:$0]  %s0, 1152, %s18, [#allocation3], 128, 128, 8
    $region5: #{tpu_custom_call.1} parent=1 // pred_fallthru
      _
    // Predicated region
    $region6: #{tpu_custom_call.1} parent=1 // pred_check
      _
    $region7: #{tpu_custom_call.1} parent=1 // pred_check_branch
      %25 = sbr.rel (0) target = $region9
    $region8: #{tpu_custom_call.1} parent=1 // pred_region
      %s27 = ssub.s32 256, 256
      %28 = vsyncadd [#allocation6], %s27
      %s29 = sshll.u32 [#allocation5], 4
      %s30 = int_to_ptr.vmem [resolvable:$true] %s29
      %35 = dma.hbm_to_vmem [thread:$0]  %s1, 256, %s30, [#allocation6], 128, 128, 8
    $region9: #{tpu_custom_call.1} parent=1 // pred_fallthru
      _
    // Predicated region
    $region10: #{tpu_custom_call.1} parent=1 // pred_check
      _
    $region11: #{tpu_custom_call.1} parent=1 // pred_check_branch
      %37 = sbr.rel (0) target = $region13
    $region12: #{tpu_custom_call.1} parent=1 // pred_region
      %s39 = ssub.s32 4096, 4096
      %40 = vsyncadd [#allocation6], %s39
      %s41 = sshll.u32 [#allocation7], 4
      %s42 = int_to_ptr.vmem [resolvable:$true] %s41
      %47 = dma.hbm_to_vmem [thread:$0]  %s2, 4096, %s42, [#allocation6], 256, 256, 16
    $region13: #{tpu_custom_call.1} parent=1 // pred_fallthru
      _
    // Predicated region
    $region14: #{tpu_custom_call.1} parent=1 // pred_check
      _
    $region15: #{tpu_custom_call.1} parent=1 // pred_check_branch
      %49 = sbr.rel (0) target = $region17
    $region16: #{tpu_custom_call.1} parent=1 // pred_region
      _
    $region17: #{tpu_custom_call.1} parent=1 // pred_fallthru
      _
    // Predicated region
    $region18: #{tpu_custom_call.1} parent=1 // pred_check
      _
    $region19: #{tpu_custom_call.1} parent=1 // pred_check_branch
      %51 = sbr.rel (0) target = $region21
    $region20: #{tpu_custom_call.1} parent=1 // pred_region
      %52 = dma.done [#allocation3], 1152
    $region21: #{tpu_custom_call.1} parent=1 // pred_fallthru
      _
    // Predicated region
    $region22: #{tpu_custom_call.1} parent=1 // pred_check
      _
    $region23: #{tpu_custom_call.1} parent=1 // pred_check_branch
      %54 = sbr.rel (0) target = $region25
    $region24: #{tpu_custom_call.1} parent=1 // pred_region
      %55 = dma.done [#allocation6], 256
    $region25: #{tpu_custom_call.1} parent=1 // pred_fallthru
      _
    // Predicated region
    $region26: #{tpu_custom_call.1} parent=1 // pred_check
      _
    $region27: #{tpu_custom_call.1} parent=1 // pred_check_branch
      %57 = sbr.rel (0) target = $region29
    $region28: #{tpu_custom_call.1} parent=1 // pred_region
      %58 = dma.done [#allocation6], 4096
    $region29: #{tpu_custom_call.1} parent=1 // pred_fallthru
      _
    %s59 = smul.u32 0, 16
    %v60 = vld [vmem:[#allocation5] sm:$0xff]
    %v61 = vld [vmem:[#allocation5 + $0x8] sm:$0x1]
    %v62 = vld [vmem:[%s3] sm:$0x3]
    %s63 = scalar_lea.vmem [#allocation2], %s59
    %v64 = vld [vmem:[%s63] sm:$0xff]
    %v65 = vld [vmem:[%s63 + $0x8] sm:$0xff]
    %v66 = vld [vmem:[%s63 + $0x10] sm:$0x3]
    %v67 = vlaneseq
    %v68 = vshrl.u32 %v67, 7
    %v69 = vsub.s32 0, %v68
    %v70 = vrot.slane %v60, %v69
    %v71 = vmul.f32 %v64, %v70
    %v72 = vmul.f32 %v65, %v70
    %v73 = vadd.f32 %v71, 0.0
    %v74 = vadd.f32 %v72, 0.0
    %v75 = vlaneseq
    %v76 = vshrl.u32 %v75, 7
    %v77 = vsub.s32 3, %v76
    %v78 = vrot.slane %v60, %v77
    %v79 = vmul.f32 %v64, %v78
    %v80 = vmul.f32 %v65, %v78
    %v81 = vmul.f32 %v66, %v78
    %vm85 = vcmask 1046528
    %v86 = vrot.slane %v79, 1
    %v87 = vrot.slane %v80, 1
    %v88 = vsel %vm85, %v86, %v87
    %v89 = vrot.slane %v81, 1
    %v90 = vsel %vm85, %v87, %v89
    %v93 = vadd.f32 %v73, %v88
    %v94 = vadd.f32 %v74, %v90
    %v95 = vlaneseq
    %v96 = vshrl.u32 %v95, 7
    %v97 = vsub.s32 6, %v96
    %v98 = vrot.slane %v60, %v97
    %v99 = vmul.f32 %v64, %v98
    %v100 = vmul.f32 %v65, %v98
    %v101 = vmul.f32 %v66, %v98
    %vm105 = vcmask 1045504
    %v106 = vrot.slane %v99, 2
    %v107 = vrot.slane %v100, 2
    %v108 = vsel %vm105, %v106, %v107
    %v109 = vrot.slane %v101, 2
    %v110 = vsel %vm105, %v107, %v109
    %v113 = vadd.f32 %v93, %v108
    %v114 = vadd.f32 %v94, %v110
    %s115 = sadd.s32 %s59, 24
    %s116 = scalar_lea.vmem [#allocation2], %s115
    %v117 = vld [vmem:[%s116] sm:$0xff]
    %v118 = vld [vmem:[%s116 + $0x8] sm:$0xff]
    %v119 = vld [vmem:[%s116 + $0x10] sm:$0x3]
    %v120 = vlaneseq
    %v121 = vshrl.u32 %v120, 7
    %v122 = vsub.s32 1, %v121
    %v123 = vrot.slane %v60, %v122
    %v124 = vmul.f32 %v117, %v123
    %v125 = vmul.f32 %v118, %v123
    %v126 = vadd.f32 %v113, %v124
    %v127 = vadd.f32 %v114, %v125
    %v128 = vlaneseq
    %v129 = vshrl.u32 %v128, 7
    %v130 = vsub.s32 4, %v129
    %v131 = vrot.slane %v60, %v130
    %v132 = vmul.f32 %v117, %v131
    %v133 = vmul.f32 %v118, %v131
    %v134 = vmul.f32 %v119, %v131
    %v138 = vrot.slane %v132, 1
    %v139 = vrot.slane %v133, 1
    %v140 = vsel %vm85, %v138, %v139
    %v141 = vrot.slane %v134, 1
    %v142 = vsel %vm85, %v139, %v141
    %v145 = vadd.f32 %v126, %v140
    %v146 = vadd.f32 %v127, %v142
    %v147 = vlaneseq
    %v148 = vshrl.u32 %v147, 7
    %v149 = vsub.s32 7, %v148
    %v150 = vrot.slane %v60, %v149
    %v151 = vmul.f32 %v117, %v150
    %v152 = vmul.f32 %v118, %v150
    %v153 = vmul.f32 %v119, %v150
    %v157 = vrot.slane %v151, 2
    %v158 = vrot.slane %v152, 2
    %v159 = vsel %vm105, %v157, %v158
    %v160 = vrot.slane %v153, 2
    %v161 = vsel %vm105, %v158, %v160
    %v164 = vadd.f32 %v145, %v159
    %v165 = vadd.f32 %v146, %v161
    %s166 = sadd.s32 %s59, 48
    %s167 = scalar_lea.vmem [#allocation2], %s166
    %v168 = vld [vmem:[%s167] sm:$0xff]
    %v169 = vld [vmem:[%s167 + $0x8] sm:$0xff]
    %v170 = vld [vmem:[%s167 + $0x10] sm:$0x3]
    %v171 = vlaneseq
    %v172 = vshrl.u32 %v171, 7
    %v173 = vsub.s32 2, %v172
    %v174 = vrot.slane %v60, %v173
    %v175 = vmul.f32 %v168, %v174
    %v176 = vmul.f32 %v169, %v174
    %v177 = vadd.f32 %v164, %v175
    %v178 = vadd.f32 %v165, %v176
    %v179 = vlaneseq
    %v180 = vshrl.u32 %v179, 7
    %v181 = vsub.s32 5, %v180
    %v182 = vrot.slane %v60, %v181
    %v183 = vmul.f32 %v168, %v182
    %v184 = vmul.f32 %v169, %v182
    %v185 = vmul.f32 %v170, %v182
    %v189 = vrot.slane %v183, 1
    %v190 = vrot.slane %v184, 1
    %v191 = vsel %vm85, %v189, %v190
    %v192 = vrot.slane %v185, 1
    %v193 = vsel %vm85, %v190, %v192
    %v196 = vadd.f32 %v177, %v191
    %v197 = vadd.f32 %v178, %v193
    %v198 = vlaneseq
    %v199 = vshrl.u32 %v198, 7
    %v200 = vsub.s32 0, %v199
    %v201 = vrot.slane %v61, %v200
    %v202 = vmul.f32 %v168, %v201
    %v203 = vmul.f32 %v169, %v201
    %v204 = vmul.f32 %v170, %v201
    %v208 = vrot.slane %v202, 2
    %v209 = vrot.slane %v203, 2
    %v210 = vsel %vm105, %v208, %v209
    %v211 = vrot.slane %v204, 2
    %v212 = vsel %vm105, %v209, %v211
    %v215 = vadd.f32 %v196, %v210
    %v216 = vadd.f32 %v197, %v212
    %v217 = vld [vmem:[#allocation7] sm:$0xff]
    %v218 = vld [vmem:[#allocation7 + $0x8] sm:$0xff]
    %v219 = vld [vmem:[#allocation7 + $0x10] sm:$0xff]
    %v220 = vld [vmem:[#allocation7 + $0x18] sm:$0xff]
    %v221 = vld [vmem:[#allocation7 + $0x20] sm:$0xff]
    %v222 = vld [vmem:[#allocation7 + $0x28] sm:$0xff]
    %v223 = vld [vmem:[#allocation7 + $0x30] sm:$0xff]
    %v224 = vld [vmem:[#allocation7 + $0x38] sm:$0xff]
    %v225 = vld [vmem:[#allocation7 + $0x40] sm:$0xff]
    %v226 = vld [vmem:[#allocation7 + $0x48] sm:$0xff]
    %v227 = vld [vmem:[#allocation7 + $0x50] sm:$0xff]
    %v228 = vld [vmem:[#allocation7 + $0x58] sm:$0xff]
    %v229 = vld [vmem:[#allocation7 + $0x60] sm:$0xff]
    %v230 = vld [vmem:[#allocation7 + $0x68] sm:$0xff]
    %v231 = vld [vmem:[#allocation7 + $0x70] sm:$0xff]
    %v232 = vld [vmem:[#allocation7 + $0x78] sm:$0xff]
    %v233 = vld [vmem:[#allocation7 + $0x80] sm:$0xff]
    %v234 = vld [vmem:[#allocation7 + $0x88] sm:$0xff]
    %v235 = vld [vmem:[#allocation7 + $0x90] sm:$0xff]
    %v236 = vld [vmem:[#allocation7 + $0x98] sm:$0xff]
    %v237 = vld [vmem:[#allocation7 + $0xa0] sm:$0xff]
    %v238 = vld [vmem:[#allocation7 + $0xa8] sm:$0xff]
    %v239 = vld [vmem:[#allocation7 + $0xb0] sm:$0xff]
    %v240 = vld [vmem:[#allocation7 + $0xb8] sm:$0xff]
    %v241 = vld [vmem:[#allocation7 + $0xc0] sm:$0xff]
    %v242 = vld [vmem:[#allocation7 + $0xc8] sm:$0xff]
    %v243 = vld [vmem:[#allocation7 + $0xd0] sm:$0xff]
    %v244 = vld [vmem:[#allocation7 + $0xd8] sm:$0xff]
    %v245 = vld [vmem:[#allocation7 + $0xe0] sm:$0xff]
    %v246 = vld [vmem:[#allocation7 + $0xe8] sm:$0xff]
    %v247 = vld [vmem:[#allocation7 + $0xf0] sm:$0xff]
    %v248 = vld [vmem:[#allocation7 + $0xf8] sm:$0xff]
    %v250 = vlaneseq
    %v251 = vshrl.u32 %v250, 7
    %v252 = vsub.s32 0, %v251
    %v253 = vrot.slane %v62, %v252
    %v254 = vlaneseq
    %v255 = vshrl.u32 %v254, 7
    %v256 = vsub.s32 1, %v255
    %v257 = vrot.slane %v62, %v256
    %260 = vmatprep.subr.mxu0 %v248
    %261 = vmatpush1.msra.mxu0 %v247
    %262 = vmatprep.subr.mxu0 %v246
    %263 = vmatpush1.msra.mxu0 %v245
    %264 = vmatprep.subr.mxu0 %v244
    %265 = vmatpush1.msra.mxu0 %v243
    %266 = vmatprep.subr.mxu0 %v242
    %267 = vmatpush1.msra.mxu0 %v241
    %268 = vmatprep.subr.mxu0 %v240
    %269 = vmatpush1.msra.mxu0 %v239
    %270 = vmatprep.subr.mxu0 %v238
    %271 = vmatpush1.msra.mxu0 %v237
    %272 = vmatprep.subr.mxu0 %v236
    %273 = vmatpush1.msra.mxu0 %v235
    %274 = vmatprep.subr.mxu0 %v234
    %275 = vmatpush1.msra.mxu0 %v233
    %276 = vmatprep.subr.mxu0 %v232
    %277 = vmatpush1.msra.mxu0 %v231
    %278 = vmatprep.subr.mxu0 %v230
    %279 = vmatpush1.msra.mxu0 %v229
    %280 = vmatprep.subr.mxu0 %v228
    %281 = vmatpush1.msra.mxu0 %v227
    %282 = vmatprep.subr.mxu0 %v226
    %283 = vmatpush1.msra.mxu0 %v225
    %284 = vmatprep.subr.mxu0 %v224
    %285 = vmatpush1.msra.mxu0 %v223
    %286 = vmatprep.subr.mxu0 %v222
    %287 = vmatpush1.msra.mxu0 %v221
    %288 = vmatprep.subr.mxu0 %v220
    %289 = vmatpush1.msra.mxu0 %v219
    %290 = vmatprep.subr.mxu0 %v218
    %291 = vmatpush1.msra.mxu0 %v217
    %292 = vmatprep.subr.mxu0 0.0
    %293 = vmatpush2.msra.mxu0 0.0
    %294 = vmatprep.subr.mxu0 0.0
    %295 = vmatpush2.msra.mxu0 0.0
    %296 = vmatprep.subr.mxu0 0.0
    %297 = vmatpush2.msra.mxu0 0.0
    %298 = vmatprep.subr.mxu0 0.0
    %299 = vmatpush2.msra.mxu0 0.0
    %300 = vmatprep.subr.mxu0 0.0
    %301 = vmatpush2.msra.mxu0 0.0
    %302 = vmatprep.subr.mxu0 0.0
    %303 = vmatpush2.msra.mxu0 0.0
    %304 = vmatprep.subr.mxu0 0.0
    %305 = vmatpush2.msra.mxu0 0.0
    %306 = vmatprep.subr.mxu0 0.0
    %307 = vmatpush2.msra.mxu0 0.0
    %308 = vmatprep.subr.mxu0 0.0
    %309 = vmatpush2.msra.mxu0 0.0
    %310 = vmatprep.subr.mxu0 0.0
    %311 = vmatpush2.msra.mxu0 0.0
    %312 = vmatprep.subr.mxu0 0.0
    %313 = vmatpush2.msra.mxu0 0.0
    %314 = vmatprep.subr.mxu0 0.0
    %315 = vmatpush2.msra.mxu0 0.0
    %316 = vmatprep.subr.mxu0 0.0
    %317 = vmatpush2.msra.mxu0 0.0
    %318 = vmatprep.subr.mxu0 0.0
    %319 = vmatpush2.msra.mxu0 0.0
    %320 = vmatprep.subr.mxu0 0.0
    %321 = vmatpush2.msra.mxu0 0.0
    %322 = vmatprep.subr.mxu0 0.0
    %323 = vmatpush2.msra.mxu0 0.0
    %324 = vmatprep.mubr.f32.mxu0 0.0
    %325 = vmatmul.mubr.f32.gmra.mxu0 %v215
    %v326 = vpop.f32.mrf.mxu0
    %v327 = vadd.f32 %v253, %v326
    %v328 = vpop.f32.mrf.mxu0
    %v329 = vadd.f32 %v257, %v328
    %330 = vmatprep.mubr.f32.mxu0 0.0
    %331 = vmatmul.mubr.f32.gmra.mxu0 %v216
    %v332 = vpop.f32.mrf.mxu0
    %v333 = vadd.f32 %v253, %v332
    %v334 = vpop.f32.mrf.mxu0
    %v335 = vadd.f32 %v257, %v334
    %336 = vdwg.mxu0
    %337 = vst [vmem:[#allocation8] sm:$0xff] %v327
    %338 = vst [vmem:[#allocation8 + $0x8] sm:$0xff] %v329
    %339 = vst [vmem:[#allocation8 + $0x10] sm:$0xff] %v333
    %340 = vst [vmem:[#allocation8 + $0x18] sm:$0xff] %v335
    // Predicated region
    $region30: #{tpu_custom_call.1} parent=1 // pred_check
      _
    $region31: #{tpu_custom_call.1} parent=1 // pred_check_branch
      %342 = sbr.rel (0) target = $region33
    $region32: #{tpu_custom_call.1} parent=1 // pred_region
      %s344 = ssub.s32 512, 512
      %345 = vsyncadd [#allocation4], %s344
      %s346 = sshll.u32 [#allocation8], 4
      %s347 = int_to_ptr.vmem [resolvable:$true] %s346
      %352 = dma.vmem_to_hbm [thread:$0]  %s347, 512, %s4, [#allocation4], 256, 256, 16
    $region33: #{tpu_custom_call.1} parent=1 // pred_fallthru
      _
    // Predicated region
    $region34: #{tpu_custom_call.1} parent=1 // pred_check
      _
    $region35: #{tpu_custom_call.1} parent=1 // pred_check_branch
      %354 = sbr.rel (0) target = $region37
    $region36: #{tpu_custom_call.1} parent=1 // pred_region
      %355 = dma.done [#allocation4], 512
    $region37: #{tpu_custom_call.1} parent=1 // pred_fallthru
      _
    %356 = vsyncpa [#allocation3], 1
    %357 = vsyncpa [#allocation6], 1
    %358 = vsyncpa [#allocation4], 1

</llo_original>
